<compile_context>
chip_gen: v7x
topology: tpu7x:2x2x1
jax: 0.10.0
libtpu: 0.0.40
codegen_flags: <defaults>
</compile_context>

<pallas_src>
import jax
import jax.numpy as jnp
from jax import lax
from jax.experimental import pallas as pl
from jax.experimental.pallas import tpu as pltpu

HIDDEN = 32            # H
GATES = 4 * HIDDEN     # 4H = 128 = one vreg lane width


def _round_up(n, m):
    return ((n + m - 1) // m) * m


def lstm_fc_kernel(x_ref, wih_ref, bias_ref, whhT_ref, fcrep_ref, out_ref):
    """LSTM over time + final Linear for one batch tile, all in VMEM.

    x_ref     : (bt, T)    f32   raw input series for this batch tile
    wih_ref   : (1, 4H)    f32   W_ih row (input_size == 1); g lanes pre-scaled by 2
    bias_ref  : (1, 4H)    f32   b_ih + b_hh; g lanes pre-scaled by 2
    whhT_ref  : (4H, 4H)   bf16  W_hh^T in rows 0:H (g columns pre-scaled by 2),
                                 zero rows H:4H (kills garbage lanes of h)
    fcrep_ref : (8, 4H)    f32   fc weight in lanes 0:H (replicated over 8 sublanes),
                                 zeros elsewhere (masks garbage lanes of h)
    out_ref   : (1, 8, bt) f32   fc(h_T) without bias, replicated over 8 sublanes
    """
    BT, T = x_ref.shape

    whhT = whhT_ref[...]                                   # (4H, 4H) bf16
    x_all = x_ref[...]                                     # (bt, T)  f32
    # Hoisted loop-invariant broadcasts (JAX does not CSE broadcast_in_dim).
    wih_b = jnp.broadcast_to(wih_ref[...], (BT, GATES))    # (bt, 4H)
    bias_b = jnp.broadcast_to(bias_ref[...], (BT, GATES))  # (bt, 4H)

    h = jnp.zeros((BT, GATES), jnp.float32)
    c = jnp.zeros((BT, GATES), jnp.float32)

    # T is small & static: fully unroll with a Python loop so every lane slice
    # of x_all is static and the LLO scheduler can pack MXU/EUP/XLU/VPU slots
    # across steps.
    for t in range(T):
        # Input contribution + bias, expanded in-kernel (one broadcast mul-add).
        gates = x_all[:, t:t + 1] * wih_b + bias_b          # lanes [i | f | 2g | o]
        if t > 0:
            # Recurrent term on the MXU with bf16 operands (native MXU dtype);
            # zero rows of whhT kill the garbage lanes of h.
            gates = gates + jnp.dot(h.astype(jnp.bfloat16), whhT,
                                    preferred_element_type=jnp.float32)

        # Single full-vreg sigmoid on the EUP; XLU rolls align the
        # [i | f | g | o] lane groups with lanes 0:H where h/c live.
        # pltpu.roll matches np.roll: result[j] = x[(j - shift) mod 128].
        sig = jax.nn.sigmoid(gates)                          # (bt, 128)
        # g columns were pre-scaled by 2, so tanh(g) = 2*sigmoid(2g) - 1.
        tanh_g = 2.0 * pltpu.roll(sig, shift=64, axis=1) - 1.0
        ig = sig * tanh_g                                    # lanes 0:H = sig(i)*tanh(g)
        c = pltpu.roll(sig, shift=96, axis=1) * c + ig       # lanes 0:H = sig(f)*c + i*g
        h = pltpu.roll(sig, shift=32, axis=1) * jnp.tanh(c)  # lanes 0:H = sig(o)*tanh(c)

    # fc with out_features == 1 as a trans-B matmul: (8,4H) . (bt,4H)^T -> (8,bt)
    # lane-dense slab (batch along lanes); fcrep's zero lanes mask h's garbage.
    out_blk = lax.dot_general(
        fcrep_ref[...], h,
        dimension_numbers=(((1,), (1,)), ((), ())),
        preferred_element_type=jnp.float32)                  # (8, bt)
    out_ref[...] = out_blk[None, :, :]


@jax.jit
def lstm_outbreak_predictor(x, params):
    """x: (B, T, 1) float32, batch-first (same as PyTorch). Returns fc(h_T).squeeze()."""
    B, T, F = x.shape
    assert F == 1
    H = HIDDEN

    # Batch tile: full sublanes, capped at 128 (h/c carry <= 32 vregs), and at
    # least 2 tiles whenever B > 8 so the "parallel" grid spans both v7x TCs.
    bt = min(128, _round_up(max(-(-B // 2), 1), 8))
    b_pad = _round_up(B, bt)
    num_tiles = b_pad // bt

    x_bt = jnp.pad(x[..., 0].astype(jnp.float32), ((0, b_pad - B), (0, 0)))  # (b_pad, T)

    # PyTorch gate order along 4H is [i | f | g | o]; pre-scale the g block by 2
    # so the kernel recovers tanh(g) from the sigmoid vreg (2*sigmoid(2g) - 1).
    gate_scale = jnp.ones((GATES,), jnp.float32).at[2 * H:3 * H].set(2.0)

    w_ih_row = params["w_ih"].reshape(1, GATES).astype(jnp.float32) * gate_scale        # (1, 4H)
    bias_row = ((params["b_ih"] + params["b_hh"])
                .reshape(1, GATES).astype(jnp.float32) * gate_scale)                    # (1, 4H)

    whhT = params["w_hh"].astype(jnp.float32).T * gate_scale[None, :]                   # (H, 4H)
    whhT_pad = (jnp.zeros((GATES, GATES), jnp.float32)
                .at[:H, :].set(whhT).astype(jnp.bfloat16))                              # (4H, 4H) bf16

    fc_rep = (jnp.zeros((8, GATES), jnp.float32)
              .at[:, :H].set(jnp.broadcast_to(params["fc_w"].astype(jnp.float32), (8, H))))

    out = pl.pallas_call(
        lstm_fc_kernel,
        out_shape=jax.ShapeDtypeStruct((num_tiles, 8, bt), jnp.float32),
        grid=(num_tiles,),
        in_specs=[
            pl.BlockSpec((bt, T), lambda b: (b, 0)),          # x tile
            pl.BlockSpec((1, GATES), lambda b: (0, 0)),       # W_ih row (scaled)
            pl.BlockSpec((1, GATES), lambda b: (0, 0)),       # bias row (scaled)
            pl.BlockSpec((GATES, GATES), lambda b: (0, 0)),   # W_hh^T (bf16, padded)
            pl.BlockSpec((8, GATES), lambda b: (0, 0)),       # fc row (replicated)
        ],
        out_specs=pl.BlockSpec((1, 8, bt), lambda b: (b, 0, 0)),
        compiler_params=pltpu.CompilerParams(
            dimension_semantics=("parallel",),   # batch tiles -> both TCs on v7x
        ),
    )(x_bt, w_ih_row, bias_row, whhT_pad, fc_rep)

    y = out[:, 0, :].reshape(b_pad)[:B] + params["fc_b"].astype(jnp.float32)[0]
    # PyTorch .squeeze(): (B,1) -> (B,), and (1,1) -> scalar when B == 1.
    return jnp.squeeze(y) if B == 1 else y


def reference_forward(x, params):
    """Pure-JAX (XLA) reference matching nn.LSTM(batch_first=True) + Linear."""
    B, T, _ = x.shape
    H = HIDDEN
    w_ih, w_hh = params["w_ih"], params["w_hh"]
    b = params["b_ih"] + params["b_hh"]
    h = jnp.zeros((B, H), jnp.float32)
    c = jnp.zeros((B, H), jnp.float32)
    for t in range(T):
        g = x[:, t, :] @ w_ih.T + h @ w_hh.T + b
        i = jax.nn.sigmoid(g[:, :H])
        f = jax.nn.sigmoid(g[:, H:2 * H])
        gg = jnp.tanh(g[:, 2 * H:3 * H])
        o = jax.nn.sigmoid(g[:, 3 * H:])
        c = f * c + i * gg
        h = o * jnp.tanh(c)
    out = h @ params["fc_w"].T + params["fc_b"]
    return jnp.squeeze(out)


def init_params(key):
    """Deterministic init matching PyTorch LSTM/Linear parameter shapes."""
    H = HIDDEN
    k = 1.0 / jnp.sqrt(jnp.float32(H))
    keys = jax.random.split(key, 6)
    return {
        "w_ih": jax.random.uniform(keys[0], (4 * H, 1), jnp.float32, -k, k),
        "w_hh": jax.random.uniform(keys[1], (4 * H, H), jnp.float32, -k, k),
        "b_ih": jax.random.uniform(keys[2], (4 * H,), jnp.float32, -k, k),
        "b_hh": jax.random.uniform(keys[3], (4 * H,), jnp.float32, -k, k),
        "fc_w": jax.random.uniform(keys[4], (1, H), jnp.float32, -k, k),
        "fc_b": jax.random.uniform(keys[5], (1,), jnp.float32, -k, k),
    }


if __name__ == "__main__":
    key = jax.random.PRNGKey(0)
    pkey, xkey, xkey2 = jax.random.split(key, 3)

    params = init_params(pkey)

    # Small demo shape (single batch tile).
    B, T = 4, 8
    x = jax.random.uniform(xkey, (B, T, 1), jnp.float32)   # normalized case counts
    y = lstm_outbreak_predictor(x, params)
    jax.block_until_ready(y)
    assert y.shape == (B,)
    y_ref = reference_forward(x, params)
    assert bool(jnp.allclose(y, y_ref, atol=2e-2, rtol=2e-2)), (y, y_ref)

    # Multi-tile + padded-batch check (exercises grid index maps / parallel axis).
    B2, T2 = 20, 8
    x2 = jax.random.uniform(xkey2, (B2, T2, 1), jnp.float32)
    y2 = lstm_outbreak_predictor(x2, params)
    jax.block_until_ready(y2)
    assert y2.shape == (B2,)
    y2_ref = reference_forward(x2, params)
    assert bool(jnp.allclose(y2, y2_ref, atol=2e-2, rtol=2e-2)), (y2, y2_ref)

    print("KERNEL_OK")
</pallas_src>

<mosaic_0001>
module attributes {stable_mosaic.version = 11 : i64} {
  func.func @lstm_fc_kernel(%arg0: i32, %arg1: memref<8x8xf32, #tpu.memory_space<vmem>>, %arg2: memref<1x128xf32, #tpu.memory_space<vmem>>, %arg3: memref<1x128xf32, #tpu.memory_space<vmem>>, %arg4: memref<128x128xbf16, #tpu.memory_space<vmem>>, %arg5: memref<8x128xf32, #tpu.memory_space<vmem>>, %arg6: memref<1x8x8xf32, #tpu.memory_space<vmem>>) attributes {dimension_semantics = [#tpu.dimension_semantics<parallel>], iteration_bounds = array<i64: 1>, scalar_prefetch = 0 : i64, scratch_operands = 0 : i64, tpu.core_type = #tpu.core_type<tc>, window_params = [{transform_indices = @transform_0, window_bounds = array<i64: 8, 8>}, {pipeline_mode = #tpu.pipeline_mode<synchronous>, transform_indices = @transform_1, window_bounds = array<i64: 1, 128>}, {pipeline_mode = #tpu.pipeline_mode<synchronous>, transform_indices = @transform_2, window_bounds = array<i64: 1, 128>}, {pipeline_mode = #tpu.pipeline_mode<synchronous>, transform_indices = @transform_3, window_bounds = array<i64: 128, 128>}, {pipeline_mode = #tpu.pipeline_mode<synchronous>, transform_indices = @transform_4, window_bounds = array<i64: 8, 128>}, {transform_indices = @transform_5, window_bounds = array<i64: 1, 8, 8>}]} {
    %c0 = arith.constant 0 : index
    %c0_0 = arith.constant 0 : index
    %0 = vector.load %arg4[%c0, %c0_0] : memref<128x128xbf16, #tpu.memory_space<vmem>>, vector<128x128xbf16>
    %c0_1 = arith.constant 0 : index
    %c0_2 = arith.constant 0 : index
    %1 = vector.load %arg1[%c0_1, %c0_2] : memref<8x8xf32, #tpu.memory_space<vmem>>, vector<8x8xf32>
    %c0_3 = arith.constant 0 : index
    %c0_4 = arith.constant 0 : index
    %2 = vector.load %arg2[%c0_3, %c0_4] : memref<1x128xf32, #tpu.memory_space<vmem>>, vector<1x128xf32>
    %3 = vector.shape_cast %2 : vector<1x128xf32> to vector<1x128xf32>
    %4 = vector.broadcast %3 : vector<1x128xf32> to vector<8x128xf32>
    %c0_5 = arith.constant 0 : index
    %c0_6 = arith.constant 0 : index
    %5 = vector.load %arg3[%c0_5, %c0_6] : memref<1x128xf32, #tpu.memory_space<vmem>>, vector<1x128xf32>
    %6 = vector.shape_cast %5 : vector<1x128xf32> to vector<1x128xf32>
    %7 = vector.broadcast %6 : vector<1x128xf32> to vector<8x128xf32>
    %cst = arith.constant 0.000000e+00 : f32
    %8 = vector.broadcast %cst : f32 to vector<8x128xf32>
    %9 = vector.extract_strided_slice %1 {offsets = [0, 0], sizes = [8, 1], strides = [1, 1]} : vector<8x8xf32> to vector<8x1xf32>
    %10 = vector.broadcast %9 : vector<8x1xf32> to vector<8x128xf32>
    %11 = arith.mulf %10, %4 : vector<8x128xf32>
    %12 = arith.addf %11, %7 : vector<8x128xf32>
    %13 = arith.negf %12 : vector<8x128xf32>
    %14 = math.exp %13 : vector<8x128xf32>
    %cst_7 = arith.constant 1.000000e+00 : f32
    %15 = vector.broadcast %cst_7 : f32 to vector<8x128xf32>
    %16 = arith.addf %15, %14 : vector<8x128xf32>
    %17 = arith.divf %15, %16 : vector<8x128xf32>
    %c64_i32 = arith.constant 64 : i32
    %18 = tpu.dynamic_rotate %17 by %c64_i32 dim 1 : vector<8x128xf32>, i32 -> vector<8x128xf32>
    %cst_8 = arith.constant 2.000000e+00 : f32
    %19 = vector.broadcast %cst_8 : f32 to vector<8x128xf32>
    %20 = arith.mulf %19, %18 : vector<8x128xf32>
    %cst_9 = arith.constant 1.000000e+00 : f32
    %21 = vector.broadcast %cst_9 : f32 to vector<8x128xf32>
    %22 = arith.subf %20, %21 : vector<8x128xf32>
    %23 = arith.mulf %17, %22 : vector<8x128xf32>
    %c96_i32 = arith.constant 96 : i32
    %24 = tpu.dynamic_rotate %17 by %c96_i32 dim 1 : vector<8x128xf32>, i32 -> vector<8x128xf32>
    %25 = arith.mulf %24, %8 : vector<8x128xf32>
    %26 = arith.addf %25, %23 : vector<8x128xf32>
    %c32_i32 = arith.constant 32 : i32
    %27 = tpu.dynamic_rotate %17 by %c32_i32 dim 1 : vector<8x128xf32>, i32 -> vector<8x128xf32>
    %28 = math.tanh %26 : vector<8x128xf32>
    %29 = arith.mulf %27, %28 : vector<8x128xf32>
    %30 = vector.extract_strided_slice %1 {offsets = [0, 1], sizes = [8, 1], strides = [1, 1]} : vector<8x8xf32> to vector<8x1xf32>
    %31 = vector.broadcast %30 : vector<8x1xf32> to vector<8x128xf32>
    %32 = arith.mulf %31, %4 : vector<8x128xf32>
    %33 = arith.addf %32, %7 : vector<8x128xf32>
    %34 = arith.truncf %29 : vector<8x128xf32> to vector<8x128xbf16>
    %cst_10 = arith.constant dense<0.000000e+00> : vector<8x128xf32>
    %35 = tpu.matmul %34, %0, %cst_10 {dimension_numbers = #tpu.dot_dimension_numbers<[1], [0], [0], [1], [0, 0, 1, 1], [], []>} : vector<8x128xbf16>, vector<128x128xbf16>, vector<8x128xf32> -> vector<8x128xf32>
    %36 = arith.addf %33, %35 : vector<8x128xf32>
    %37 = arith.negf %36 : vector<8x128xf32>
    %38 = math.exp %37 : vector<8x128xf32>
    %cst_11 = arith.constant 1.000000e+00 : f32
    %39 = vector.broadcast %cst_11 : f32 to vector<8x128xf32>
    %40 = arith.addf %39, %38 : vector<8x128xf32>
    %41 = arith.divf %39, %40 : vector<8x128xf32>
    %c64_i32_12 = arith.constant 64 : i32
    %42 = tpu.dynamic_rotate %41 by %c64_i32_12 dim 1 : vector<8x128xf32>, i32 -> vector<8x128xf32>
    %cst_13 = arith.constant 2.000000e+00 : f32
    %43 = vector.broadcast %cst_13 : f32 to vector<8x128xf32>
    %44 = arith.mulf %43, %42 : vector<8x128xf32>
    %cst_14 = arith.constant 1.000000e+00 : f32
    %45 = vector.broadcast %cst_14 : f32 to vector<8x128xf32>
    %46 = arith.subf %44, %45 : vector<8x128xf32>
    %47 = arith.mulf %41, %46 : vector<8x128xf32>
    %c96_i32_15 = arith.constant 96 : i32
    %48 = tpu.dynamic_rotate %41 by %c96_i32_15 dim 1 : vector<8x128xf32>, i32 -> vector<8x128xf32>
    %49 = arith.mulf %48, %26 : vector<8x128xf32>
    %50 = arith.addf %49, %47 : vector<8x128xf32>
    %c32_i32_16 = arith.constant 32 : i32
    %51 = tpu.dynamic_rotate %41 by %c32_i32_16 dim 1 : vector<8x128xf32>, i32 -> vector<8x128xf32>
    %52 = math.tanh %50 : vector<8x128xf32>
    %53 = arith.mulf %51, %52 : vector<8x128xf32>
    %54 = vector.extract_strided_slice %1 {offsets = [0, 2], sizes = [8, 1], strides = [1, 1]} : vector<8x8xf32> to vector<8x1xf32>
    %55 = vector.broadcast %54 : vector<8x1xf32> to vector<8x128xf32>
    %56 = arith.mulf %55, %4 : vector<8x128xf32>
    %57 = arith.addf %56, %7 : vector<8x128xf32>
    %58 = arith.truncf %53 : vector<8x128xf32> to vector<8x128xbf16>
    %cst_17 = arith.constant dense<0.000000e+00> : vector<8x128xf32>
    %59 = tpu.matmul %58, %0, %cst_17 {dimension_numbers = #tpu.dot_dimension_numbers<[1], [0], [0], [1], [0, 0, 1, 1], [], []>} : vector<8x128xbf16>, vector<128x128xbf16>, vector<8x128xf32> -> vector<8x128xf32>
    %60 = arith.addf %57, %59 : vector<8x128xf32>
    %61 = arith.negf %60 : vector<8x128xf32>
    %62 = math.exp %61 : vector<8x128xf32>
    %cst_18 = arith.constant 1.000000e+00 : f32
    %63 = vector.broadcast %cst_18 : f32 to vector<8x128xf32>
    %64 = arith.addf %63, %62 : vector<8x128xf32>
    %65 = arith.divf %63, %64 : vector<8x128xf32>
    %c64_i32_19 = arith.constant 64 : i32
    %66 = tpu.dynamic_rotate %65 by %c64_i32_19 dim 1 : vector<8x128xf32>, i32 -> vector<8x128xf32>
    %cst_20 = arith.constant 2.000000e+00 : f32
    %67 = vector.broadcast %cst_20 : f32 to vector<8x128xf32>
    %68 = arith.mulf %67, %66 : vector<8x128xf32>
    %cst_21 = arith.constant 1.000000e+00 : f32
    %69 = vector.broadcast %cst_21 : f32 to vector<8x128xf32>
    %70 = arith.subf %68, %69 : vector<8x128xf32>
    %71 = arith.mulf %65, %70 : vector<8x128xf32>
    %c96_i32_22 = arith.constant 96 : i32
    %72 = tpu.dynamic_rotate %65 by %c96_i32_22 dim 1 : vector<8x128xf32>, i32 -> vector<8x128xf32>
    %73 = arith.mulf %72, %50 : vector<8x128xf32>
    %74 = arith.addf %73, %71 : vector<8x128xf32>
    %c32_i32_23 = arith.constant 32 : i32
    %75 = tpu.dynamic_rotate %65 by %c32_i32_23 dim 1 : vector<8x128xf32>, i32 -> vector<8x128xf32>
    %76 = math.tanh %74 : vector<8x128xf32>
    %77 = arith.mulf %75, %76 : vector<8x128xf32>
    %78 = vector.extract_strided_slice %1 {offsets = [0, 3], sizes = [8, 1], strides = [1, 1]} : vector<8x8xf32> to vector<8x1xf32>
    %79 = vector.broadcast %78 : vector<8x1xf32> to vector<8x128xf32>
    %80 = arith.mulf %79, %4 : vector<8x128xf32>
    %81 = arith.addf %80, %7 : vector<8x128xf32>
    %82 = arith.truncf %77 : vector<8x128xf32> to vector<8x128xbf16>
    %cst_24 = arith.constant dense<0.000000e+00> : vector<8x128xf32>
    %83 = tpu.matmul %82, %0, %cst_24 {dimension_numbers = #tpu.dot_dimension_numbers<[1], [0], [0], [1], [0, 0, 1, 1], [], []>} : vector<8x128xbf16>, vector<128x128xbf16>, vector<8x128xf32> -> vector<8x128xf32>
    %84 = arith.addf %81, %83 : vector<8x128xf32>
    %85 = arith.negf %84 : vector<8x128xf32>
    %86 = math.exp %85 : vector<8x128xf32>
    %cst_25 = arith.constant 1.000000e+00 : f32
    %87 = vector.broadcast %cst_25 : f32 to vector<8x128xf32>
    %88 = arith.addf %87, %86 : vector<8x128xf32>
    %89 = arith.divf %87, %88 : vector<8x128xf32>
    %c64_i32_26 = arith.constant 64 : i32
    %90 = tpu.dynamic_rotate %89 by %c64_i32_26 dim 1 : vector<8x128xf32>, i32 -> vector<8x128xf32>
    %cst_27 = arith.constant 2.000000e+00 : f32
    %91 = vector.broadcast %cst_27 : f32 to vector<8x128xf32>
    %92 = arith.mulf %91, %90 : vector<8x128xf32>
    %cst_28 = arith.constant 1.000000e+00 : f32
    %93 = vector.broadcast %cst_28 : f32 to vector<8x128xf32>
    %94 = arith.subf %92, %93 : vector<8x128xf32>
    %95 = arith.mulf %89, %94 : vector<8x128xf32>
    %c96_i32_29 = arith.constant 96 : i32
    %96 = tpu.dynamic_rotate %89 by %c96_i32_29 dim 1 : vector<8x128xf32>, i32 -> vector<8x128xf32>
    %97 = arith.mulf %96, %74 : vector<8x128xf32>
    %98 = arith.addf %97, %95 : vector<8x128xf32>
    %c32_i32_30 = arith.constant 32 : i32
    %99 = tpu.dynamic_rotate %89 by %c32_i32_30 dim 1 : vector<8x128xf32>, i32 -> vector<8x128xf32>
    %100 = math.tanh %98 : vector<8x128xf32>
    %101 = arith.mulf %99, %100 : vector<8x128xf32>
    %102 = vector.extract_strided_slice %1 {offsets = [0, 4], sizes = [8, 1], strides = [1, 1]} : vector<8x8xf32> to vector<8x1xf32>
    %103 = vector.broadcast %102 : vector<8x1xf32> to vector<8x128xf32>
    %104 = arith.mulf %103, %4 : vector<8x128xf32>
    %105 = arith.addf %104, %7 : vector<8x128xf32>
    %106 = arith.truncf %101 : vector<8x128xf32> to vector<8x128xbf16>
    %cst_31 = arith.constant dense<0.000000e+00> : vector<8x128xf32>
    %107 = tpu.matmul %106, %0, %cst_31 {dimension_numbers = #tpu.dot_dimension_numbers<[1], [0], [0], [1], [0, 0, 1, 1], [], []>} : vector<8x128xbf16>, vector<128x128xbf16>, vector<8x128xf32> -> vector<8x128xf32>
    %108 = arith.addf %105, %107 : vector<8x128xf32>
    %109 = arith.negf %108 : vector<8x128xf32>
    %110 = math.exp %109 : vector<8x128xf32>
    %cst_32 = arith.constant 1.000000e+00 : f32
    %111 = vector.broadcast %cst_32 : f32 to vector<8x128xf32>
    %112 = arith.addf %111, %110 : vector<8x128xf32>
    %113 = arith.divf %111, %112 : vector<8x128xf32>
    %c64_i32_33 = arith.constant 64 : i32
    %114 = tpu.dynamic_rotate %113 by %c64_i32_33 dim 1 : vector<8x128xf32>, i32 -> vector<8x128xf32>
    %cst_34 = arith.constant 2.000000e+00 : f32
    %115 = vector.broadcast %cst_34 : f32 to vector<8x128xf32>
    %116 = arith.mulf %115, %114 : vector<8x128xf32>
    %cst_35 = arith.constant 1.000000e+00 : f32
    %117 = vector.broadcast %cst_35 : f32 to vector<8x128xf32>
    %118 = arith.subf %116, %117 : vector<8x128xf32>
    %119 = arith.mulf %113, %118 : vector<8x128xf32>
    %c96_i32_36 = arith.constant 96 : i32
    %120 = tpu.dynamic_rotate %113 by %c96_i32_36 dim 1 : vector<8x128xf32>, i32 -> vector<8x128xf32>
    %121 = arith.mulf %120, %98 : vector<8x128xf32>
    %122 = arith.addf %121, %119 : vector<8x128xf32>
    %c32_i32_37 = arith.constant 32 : i32
    %123 = tpu.dynamic_rotate %113 by %c32_i32_37 dim 1 : vector<8x128xf32>, i32 -> vector<8x128xf32>
    %124 = math.tanh %122 : vector<8x128xf32>
    %125 = arith.mulf %123, %124 : vector<8x128xf32>
    %126 = vector.extract_strided_slice %1 {offsets = [0, 5], sizes = [8, 1], strides = [1, 1]} : vector<8x8xf32> to vector<8x1xf32>
    %127 = vector.broadcast %126 : vector<8x1xf32> to vector<8x128xf32>
    %128 = arith.mulf %127, %4 : vector<8x128xf32>
    %129 = arith.addf %128, %7 : vector<8x128xf32>
    %130 = arith.truncf %125 : vector<8x128xf32> to vector<8x128xbf16>
    %cst_38 = arith.constant dense<0.000000e+00> : vector<8x128xf32>
    %131 = tpu.matmul %130, %0, %cst_38 {dimension_numbers = #tpu.dot_dimension_numbers<[1], [0], [0], [1], [0, 0, 1, 1], [], []>} : vector<8x128xbf16>, vector<128x128xbf16>, vector<8x128xf32> -> vector<8x128xf32>
    %132 = arith.addf %129, %131 : vector<8x128xf32>
    %133 = arith.negf %132 : vector<8x128xf32>
    %134 = math.exp %133 : vector<8x128xf32>
    %cst_39 = arith.constant 1.000000e+00 : f32
    %135 = vector.broadcast %cst_39 : f32 to vector<8x128xf32>
    %136 = arith.addf %135, %134 : vector<8x128xf32>
    %137 = arith.divf %135, %136 : vector<8x128xf32>
    %c64_i32_40 = arith.constant 64 : i32
    %138 = tpu.dynamic_rotate %137 by %c64_i32_40 dim 1 : vector<8x128xf32>, i32 -> vector<8x128xf32>
    %cst_41 = arith.constant 2.000000e+00 : f32
    %139 = vector.broadcast %cst_41 : f32 to vector<8x128xf32>
    %140 = arith.mulf %139, %138 : vector<8x128xf32>
    %cst_42 = arith.constant 1.000000e+00 : f32
    %141 = vector.broadcast %cst_42 : f32 to vector<8x128xf32>
    %142 = arith.subf %140, %141 : vector<8x128xf32>
    %143 = arith.mulf %137, %142 : vector<8x128xf32>
    %c96_i32_43 = arith.constant 96 : i32
    %144 = tpu.dynamic_rotate %137 by %c96_i32_43 dim 1 : vector<8x128xf32>, i32 -> vector<8x128xf32>
    %145 = arith.mulf %144, %122 : vector<8x128xf32>
    %146 = arith.addf %145, %143 : vector<8x128xf32>
    %c32_i32_44 = arith.constant 32 : i32
    %147 = tpu.dynamic_rotate %137 by %c32_i32_44 dim 1 : vector<8x128xf32>, i32 -> vector<8x128xf32>
    %148 = math.tanh %146 : vector<8x128xf32>
    %149 = arith.mulf %147, %148 : vector<8x128xf32>
    %150 = vector.extract_strided_slice %1 {offsets = [0, 6], sizes = [8, 1], strides = [1, 1]} : vector<8x8xf32> to vector<8x1xf32>
    %151 = vector.broadcast %150 : vector<8x1xf32> to vector<8x128xf32>
    %152 = arith.mulf %151, %4 : vector<8x128xf32>
    %153 = arith.addf %152, %7 : vector<8x128xf32>
    %154 = arith.truncf %149 : vector<8x128xf32> to vector<8x128xbf16>
    %cst_45 = arith.constant dense<0.000000e+00> : vector<8x128xf32>
    %155 = tpu.matmul %154, %0, %cst_45 {dimension_numbers = #tpu.dot_dimension_numbers<[1], [0], [0], [1], [0, 0, 1, 1], [], []>} : vector<8x128xbf16>, vector<128x128xbf16>, vector<8x128xf32> -> vector<8x128xf32>
    %156 = arith.addf %153, %155 : vector<8x128xf32>
    %157 = arith.negf %156 : vector<8x128xf32>
    %158 = math.exp %157 : vector<8x128xf32>
    %cst_46 = arith.constant 1.000000e+00 : f32
    %159 = vector.broadcast %cst_46 : f32 to vector<8x128xf32>
    %160 = arith.addf %159, %158 : vector<8x128xf32>
    %161 = arith.divf %159, %160 : vector<8x128xf32>
    %c64_i32_47 = arith.constant 64 : i32
    %162 = tpu.dynamic_rotate %161 by %c64_i32_47 dim 1 : vector<8x128xf32>, i32 -> vector<8x128xf32>
    %cst_48 = arith.constant 2.000000e+00 : f32
    %163 = vector.broadcast %cst_48 : f32 to vector<8x128xf32>
    %164 = arith.mulf %163, %162 : vector<8x128xf32>
    %cst_49 = arith.constant 1.000000e+00 : f32
    %165 = vector.broadcast %cst_49 : f32 to vector<8x128xf32>
    %166 = arith.subf %164, %165 : vector<8x128xf32>
    %167 = arith.mulf %161, %166 : vector<8x128xf32>
    %c96_i32_50 = arith.constant 96 : i32
    %168 = tpu.dynamic_rotate %161 by %c96_i32_50 dim 1 : vector<8x128xf32>, i32 -> vector<8x128xf32>
    %169 = arith.mulf %168, %146 : vector<8x128xf32>
    %170 = arith.addf %169, %167 : vector<8x128xf32>
    %c32_i32_51 = arith.constant 32 : i32
    %171 = tpu.dynamic_rotate %161 by %c32_i32_51 dim 1 : vector<8x128xf32>, i32 -> vector<8x128xf32>
    %172 = math.tanh %170 : vector<8x128xf32>
    %173 = arith.mulf %171, %172 : vector<8x128xf32>
    %174 = vector.extract_strided_slice %1 {offsets = [0, 7], sizes = [8, 1], strides = [1, 1]} : vector<8x8xf32> to vector<8x1xf32>
    %175 = vector.broadcast %174 : vector<8x1xf32> to vector<8x128xf32>
    %176 = arith.mulf %175, %4 : vector<8x128xf32>
    %177 = arith.addf %176, %7 : vector<8x128xf32>
    %178 = arith.truncf %173 : vector<8x128xf32> to vector<8x128xbf16>
    %cst_52 = arith.constant dense<0.000000e+00> : vector<8x128xf32>
    %179 = tpu.matmul %178, %0, %cst_52 {dimension_numbers = #tpu.dot_dimension_numbers<[1], [0], [0], [1], [0, 0, 1, 1], [], []>} : vector<8x128xbf16>, vector<128x128xbf16>, vector<8x128xf32> -> vector<8x128xf32>
    %180 = arith.addf %177, %179 : vector<8x128xf32>
    %181 = arith.negf %180 : vector<8x128xf32>
    %182 = math.exp %181 : vector<8x128xf32>
    %cst_53 = arith.constant 1.000000e+00 : f32
    %183 = vector.broadcast %cst_53 : f32 to vector<8x128xf32>
    %184 = arith.addf %183, %182 : vector<8x128xf32>
    %185 = arith.divf %183, %184 : vector<8x128xf32>
    %c64_i32_54 = arith.constant 64 : i32
    %186 = tpu.dynamic_rotate %185 by %c64_i32_54 dim 1 : vector<8x128xf32>, i32 -> vector<8x128xf32>
    %cst_55 = arith.constant 2.000000e+00 : f32
    %187 = vector.broadcast %cst_55 : f32 to vector<8x128xf32>
    %188 = arith.mulf %187, %186 : vector<8x128xf32>
    %cst_56 = arith.constant 1.000000e+00 : f32
    %189 = vector.broadcast %cst_56 : f32 to vector<8x128xf32>
    %190 = arith.subf %188, %189 : vector<8x128xf32>
    %191 = arith.mulf %185, %190 : vector<8x128xf32>
    %c96_i32_57 = arith.constant 96 : i32
    %192 = tpu.dynamic_rotate %185 by %c96_i32_57 dim 1 : vector<8x128xf32>, i32 -> vector<8x128xf32>
    %193 = arith.mulf %192, %170 : vector<8x128xf32>
    %194 = arith.addf %193, %191 : vector<8x128xf32>
    %c32_i32_58 = arith.constant 32 : i32
    %195 = tpu.dynamic_rotate %185 by %c32_i32_58 dim 1 : vector<8x128xf32>, i32 -> vector<8x128xf32>
    %196 = math.tanh %194 : vector<8x128xf32>
    %197 = arith.mulf %195, %196 : vector<8x128xf32>
    %c0_59 = arith.constant 0 : index
    %c0_60 = arith.constant 0 : index
    %198 = vector.load %arg5[%c0_59, %c0_60] : memref<8x128xf32, #tpu.memory_space<vmem>>, vector<8x128xf32>
    %cst_61 = arith.constant dense<0.000000e+00> : vector<8x8xf32>
    %199 = tpu.matmul %198, %197, %cst_61 {dimension_numbers = #tpu.dot_dimension_numbers<[1], [1], [0], [0], [0, 0, 1, 0], [], []>} : vector<8x128xf32>, vector<8x128xf32>, vector<8x8xf32> -> vector<8x8xf32>
    %200 = vector.shape_cast %199 : vector<8x8xf32> to vector<1x8x8xf32>
    %c0_62 = arith.constant 0 : index
    %c0_63 = arith.constant 0 : index
    %c0_64 = arith.constant 0 : index
    %201 = vector.load %arg6[%c0_62, %c0_63, %c0_64] : memref<1x8x8xf32, #tpu.memory_space<vmem>>, vector<1x8x8xf32>
    tpu.vector_store %arg6[%c0_62, %c0_63, %c0_64], %200 {strides = array<i32>} : memref<1x8x8xf32, #tpu.memory_space<vmem>>, vector<1x8x8xf32>,
    return
  }
  func.func @transform_0(%arg0: i32) -> (i32, i32) {
    %c0_i32 = arith.constant 0 : i32
    %c0_i32_0 = arith.constant 0 : i32
    return %arg0, %c0_i32 : i32, i32
  }
  func.func @transform_1(%arg0: i32) -> (i32, i32) {
    %c0_i32 = arith.constant 0 : i32
    %c0_i32_0 = arith.constant 0 : i32
    %c0_i32_1 = arith.constant 0 : i32
    return %c0_i32, %c0_i32_0 : i32, i32
  }
  func.func @transform_2(%arg0: i32) -> (i32, i32) {
    %c0_i32 = arith.constant 0 : i32
    %c0_i32_0 = arith.constant 0 : i32
    %c0_i32_1 = arith.constant 0 : i32
    return %c0_i32, %c0_i32_0 : i32, i32
  }
  func.func @transform_3(%arg0: i32) -> (i32, i32) {
    %c0_i32 = arith.constant 0 : i32
    %c0_i32_0 = arith.constant 0 : i32
    %c0_i32_1 = arith.constant 0 : i32
    return %c0_i32, %c0_i32_0 : i32, i32
  }
  func.func @transform_4(%arg0: i32) -> (i32, i32) {
    %c0_i32 = arith.constant 0 : i32
    %c0_i32_0 = arith.constant 0 : i32
    %c0_i32_1 = arith.constant 0 : i32
    return %c0_i32, %c0_i32_0 : i32, i32
  }
  func.func @transform_5(%arg0: i32) -> (i32, i32, i32) {
    %c0_i32 = arith.constant 0 : i32
    %c0_i32_0 = arith.constant 0 : i32
    %c0_i32_1 = arith.constant 0 : i32
    return %arg0, %c0_i32, %c0_i32_0 : i32, i32, i32
  }
}

</mosaic_0001>

<llo_original>
// kernel: lstm_outbreak_predictor.1
$region0: #{lstm_outbreak_predictor.1}
  #allocation0 [shape = 'u32[]', space=smem, size = 0x4, offset = 0x4, fixed_abs, tag = 'smem constant byte address 0x4 - core index']
  #allocation1 [shape = 'u32[144,128]{1,0:T(1,128)}', space=vmem, size = 0x12000, scoped, tag = 'internal scratch']
  %s0 = inlined_call_operand.vmem [shape: f32[8,8], index: 0, kind: input, shape index: {}]
  %s1 = inlined_call_operand.vmem [shape: f32[1,128], index: 1, kind: input, shape index: {}]
  %s2 = inlined_call_operand.vmem [shape: f32[1,128], index: 2, kind: input, shape index: {}]
  %s3 = inlined_call_operand.vmem [shape: bf16[128,128], index: 3, kind: input, shape index: {}]
  %s4 = inlined_call_operand.vmem [shape: f32[8,128], index: 4, kind: input, shape index: {}]
  %s5 = inlined_call_operand.vmem [shape: f32[1,8,8], index: 5, kind: output, shape index: {}]
  %s6 = sld [smem:[#allocation0]]
  $region30: #{lstm_outbreak_predictor.1} parent=0
    _
  %s8 = ssub.s32 1, %s6
  %s9 = scalar_select 0, %s8, %s6
  // Predicated region
  $region2: #{lstm_outbreak_predictor.1} parent=0 // pred_check
    _
  $region3: #{lstm_outbreak_predictor.1} parent=0 // pred_check_branch
    %11 = sbr.rel (0) target = $region5
  $region4: #{lstm_outbreak_predictor.1} parent=0 // pred_region
    _
  $region5: #{lstm_outbreak_predictor.1} parent=0 // pred_fallthru
    _
  // Predicated region
  $region6: #{lstm_outbreak_predictor.1} parent=0 // pred_check
    _
  $region7: #{lstm_outbreak_predictor.1} parent=0 // pred_check_branch
    %13 = sbr.rel (0) target = $region9
  $region8: #{lstm_outbreak_predictor.1} parent=0 // pred_region
    _
  $region9: #{lstm_outbreak_predictor.1} parent=0 // pred_fallthru
    _
  // Predicated region
  $region10: #{lstm_outbreak_predictor.1} parent=0 // pred_check
    _
  $region11: #{lstm_outbreak_predictor.1} parent=0 // pred_check_branch
    %15 = sbr.rel (0) target = $region13
  $region12: #{lstm_outbreak_predictor.1} parent=0 // pred_region
    _
  $region13: #{lstm_outbreak_predictor.1} parent=0 // pred_fallthru
    _
  // Predicated region
  $region14: #{lstm_outbreak_predictor.1} parent=0 // pred_check
    _
  $region15: #{lstm_outbreak_predictor.1} parent=0 // pred_check_branch
    %17 = sbr.rel (0) target = $region17
  $region16: #{lstm_outbreak_predictor.1} parent=0 // pred_region
    _
  $region17: #{lstm_outbreak_predictor.1} parent=0 // pred_fallthru
    _
  // Predicated region
  $region18: #{lstm_outbreak_predictor.1} parent=0 // pred_check
    _
  $region19: #{lstm_outbreak_predictor.1} parent=0 // pred_check_branch
    %19 = sbr.rel (0) target = $region21
  $region20: #{lstm_outbreak_predictor.1} parent=0 // pred_region
    _
  $region21: #{lstm_outbreak_predictor.1} parent=0 // pred_fallthru
    _
  %v21 = vld [vmem:[%s3] sm:$0xf]
  %v22 = vld [vmem:[%s3 + $0x4] sm:$0xf]
  %v23 = vld [vmem:[%s3 + $0x8] sm:$0xf]
  %v24 = vld [vmem:[%s3 + $0xc] sm:$0xf]
  %v25 = vld [vmem:[%s3 + $0x10] sm:$0xf]
  %v26 = vld [vmem:[%s3 + $0x14] sm:$0xf]
  %v27 = vld [vmem:[%s3 + $0x18] sm:$0xf]
  %v28 = vld [vmem:[%s3 + $0x1c] sm:$0xf]
  %v29 = vld [vmem:[%s3 + $0x20] sm:$0xf]
  %v30 = vld [vmem:[%s3 + $0x24] sm:$0xf]
  %v31 = vld [vmem:[%s3 + $0x28] sm:$0xf]
  %v32 = vld [vmem:[%s3 + $0x2c] sm:$0xf]
  %v33 = vld [vmem:[%s3 + $0x30] sm:$0xf]
  %v34 = vld [vmem:[%s3 + $0x34] sm:$0xf]
  %v35 = vld [vmem:[%s3 + $0x38] sm:$0xf]
  %v36 = vld [vmem:[%s3 + $0x3c] sm:$0xf]
  %v37 = vld [vmem:[%s0] sm:$0xff]
  %v38 = vld [vmem:[%s1] sm:$0x1]
  %v40 = vlaneseq
  %v41 = vshrl.u32 %v40, 7
  %v42 = vsub.s32 0, %v41
  %v43 = vrot.slane %v38, %v42
  %v45 = vld [vmem:[%s2] sm:$0x1]
  %v47 = vlaneseq
  %v48 = vshrl.u32 %v47, 7
  %v49 = vsub.s32 0, %v48
  %v50 = vrot.slane %v45, %v49
  %53 = vset.pattern.permute.xlu0 0
  %54 = vperm.xlu0 %53, %v37
  %v55 = vpop.permute.xlu0 %54
  %v57 = vmul.f32 %v55, %v43
  %v58 = vadd.f32 %v57, %v50
  %v59 = vxor.u32 %v58, 2147483648
  %v60 = vmul.f32 %v59, 1.442695
  %v61 = vpow.pop %v60
  %v62 = vadd.f32 %v61, 1.0
  %v63 = vrcp.pop %v62
  %v64 = vmul.f32 1.0, %v63
  %65 = vrot.lane.b32.xlu0 %v64, 64
  %v66 = vpop.permute.xlu0 %65
  %v67 = vmul.f32 %v66, 2.0
  %v68 = vsub.f32 %v67, 1.0
  %v69 = vmul.f32 %v64, %v68
  %70 = vrot.lane.b32.xlu0 %v64, 96
  %v71 = vpop.permute.xlu0 %70
  %v72 = vmul.f32 %v71, 0.0
  %v73 = vadd.f32 %v72, %v69
  %74 = vrot.lane.b32.xlu0 %v64, 32
  %v75 = vpop.permute.xlu0 %74
  %v76 = vtanh.pop %v73
  %v77 = vmul.f32 %v75, %v76
  %78 = vset.pattern.permute.xlu0 1
  %79 = vperm.xlu0 %78, %v37
  %v80 = vpop.permute.xlu0 %79
  %v82 = vmul.f32 %v80, %v43
  %v83 = vadd.f32 %v82, %v50
  %v84 = vpack.c.bf16 %v77, %v77
  %v101 = vunpack.c.l.b16 %v21
  %v102 = vunpack.c.l.b16 %v22
  %v103 = vunpack.c.l.b16 %v23
  %v104 = vunpack.c.l.b16 %v24
  %v105 = vunpack.c.l.b16 %v25
  %v106 = vunpack.c.l.b16 %v26
  %v107 = vunpack.c.l.b16 %v27
  %v108 = vunpack.c.l.b16 %v28
  %v109 = vunpack.c.l.b16 %v29
  %v110 = vunpack.c.l.b16 %v30
  %v111 = vunpack.c.l.b16 %v31
  %v112 = vunpack.c.l.b16 %v32
  %v113 = vunpack.c.l.b16 %v33
  %v114 = vunpack.c.l.b16 %v34
  %v115 = vunpack.c.l.b16 %v35
  %v116 = vunpack.c.l.b16 %v36
  %v117 = vpack.c.b16 %v102, %v101
  %v118 = vpack.c.b16 %v104, %v103
  %v119 = vpack.c.b16 %v106, %v105
  %v120 = vpack.c.b16 %v108, %v107
  %v121 = vpack.c.b16 %v110, %v109
  %v122 = vpack.c.b16 %v112, %v111
  %v123 = vpack.c.b16 %v114, %v113
  %v124 = vpack.c.b16 %v116, %v115
  %133 = vmatprep.subr.bf16.mxu0 0
  %134 = vmatpush1.bf16.msra.mxu0 %v117
  %135 = vmatprep.subr.bf16.mxu0 0
  %136 = vmatpush1.bf16.msra.mxu0 %v118
  %137 = vmatprep.subr.bf16.mxu0 0
  %138 = vmatpush1.bf16.msra.mxu0 %v119
  %139 = vmatprep.subr.bf16.mxu0 0
  %140 = vmatpush1.bf16.msra.mxu0 %v120
  %141 = vmatprep.subr.bf16.mxu0 0
  %142 = vmatpush1.bf16.msra.mxu0 %v121
  %143 = vmatprep.subr.bf16.mxu0 0
  %144 = vmatpush1.bf16.msra.mxu0 %v122
  %145 = vmatprep.subr.bf16.mxu0 0
  %146 = vmatpush1.bf16.msra.mxu0 %v123
  %147 = vmatprep.subr.bf16.mxu0 0
  %148 = vmatpush1.bf16.msra.mxu0 %v124
  %149 = vmatprep.subr.bf16.mxu0 0
  %150 = vmatpush1.bf16.msra.mxu0 0
  %151 = vmatprep.subr.bf16.mxu0 0
  %152 = vmatpush1.bf16.msra.mxu0 0
  %153 = vmatprep.subr.bf16.mxu0 0
  %154 = vmatpush1.bf16.msra.mxu0 0
  %155 = vmatprep.subr.bf16.mxu0 0
  %156 = vmatpush1.bf16.msra.mxu0 0
  %157 = vmatprep.subr.bf16.mxu0 0
  %158 = vmatpush1.bf16.msra.mxu0 0
  %159 = vmatprep.subr.bf16.mxu0 0
  %160 = vmatpush1.bf16.msra.mxu0 0
  %161 = vmatprep.subr.bf16.mxu0 0
  %162 = vmatpush1.bf16.msra.mxu0 0
  %163 = vmatprep.subr.bf16.mxu0 0
  %164 = vmatpush1.bf16.msra.mxu0 0
  %165 = vmatprep.mubr.bf16.mxu0 0
  %166 = vmatmul.mubr.bf16.gmra.mrb[0].mxu0 %v84
  %v167 = vpop.f32.mrb[0].mxu0
  %v168 = vadd.f32 0.0, %v167
  %v169 = vpop.f32.mrb[0].mxu0
  %v170 = vpop.f32.mrb[0].mxu0
  %v171 = vpop.f32.mrb[0].mxu0
  %172 = vdwg.mxu0
  %v173 = vadd.f32 %v83, %v168
  %v174 = vxor.u32 %v173, 2147483648
  %v175 = vmul.f32 %v174, 1.442695
  %v176 = vpow.pop %v175
  %v177 = vadd.f32 %v176, 1.0
  %v178 = vrcp.pop %v177
  %v179 = vmul.f32 1.0, %v178
  %180 = vrot.lane.b32.xlu0 %v179, 64
  %v181 = vpop.permute.xlu0 %180
  %v182 = vmul.f32 %v181, 2.0
  %v183 = vsub.f32 %v182, 1.0
  %v184 = vmul.f32 %v179, %v183
  %185 = vrot.lane.b32.xlu0 %v179, 96
  %v186 = vpop.permute.xlu0 %185
  %v187 = vmul.f32 %v186, %v73
  %v188 = vadd.f32 %v187, %v184
  %189 = vrot.lane.b32.xlu0 %v179, 32
  %v190 = vpop.permute.xlu0 %189
  %v191 = vtanh.pop %v188
  %v192 = vmul.f32 %v190, %v191
  %193 = vset.pattern.permute.xlu0 2
  %194 = vperm.xlu0 %193, %v37
  %v195 = vpop.permute.xlu0 %194
  %v197 = vmul.f32 %v195, %v43
  %v198 = vadd.f32 %v197, %v50
  %v199 = vpack.c.bf16 %v192, %v192
  %200 = vmatprep.subr.bf16.mxu0 0
  %201 = vmatpush1.bf16.msra.mxu0 %v117
  %202 = vmatprep.subr.bf16.mxu0 0
  %203 = vmatpush1.bf16.msra.mxu0 %v118
  %204 = vmatprep.subr.bf16.mxu0 0
  %205 = vmatpush1.bf16.msra.mxu0 %v119
  %206 = vmatprep.subr.bf16.mxu0 0
  %207 = vmatpush1.bf16.msra.mxu0 %v120
  %208 = vmatprep.subr.bf16.mxu0 0
  %209 = vmatpush1.bf16.msra.mxu0 %v121
  %210 = vmatprep.subr.bf16.mxu0 0
  %211 = vmatpush1.bf16.msra.mxu0 %v122
  %212 = vmatprep.subr.bf16.mxu0 0
  %213 = vmatpush1.bf16.msra.mxu0 %v123
  %214 = vmatprep.subr.bf16.mxu0 0
  %215 = vmatpush1.bf16.msra.mxu0 %v124
  %216 = vmatprep.subr.bf16.mxu0 0
  %217 = vmatpush1.bf16.msra.mxu0 0
  %218 = vmatprep.subr.bf16.mxu0 0
  %219 = vmatpush1.bf16.msra.mxu0 0
  %220 = vmatprep.subr.bf16.mxu0 0
  %221 = vmatpush1.bf16.msra.mxu0 0
  %222 = vmatprep.subr.bf16.mxu0 0
  %223 = vmatpush1.bf16.msra.mxu0 0
  %224 = vmatprep.subr.bf16.mxu0 0
  %225 = vmatpush1.bf16.msra.mxu0 0
  %226 = vmatprep.subr.bf16.mxu0 0
  %227 = vmatpush1.bf16.msra.mxu0 0
  %228 = vmatprep.subr.bf16.mxu0 0
  %229 = vmatpush1.bf16.msra.mxu0 0
  %230 = vmatprep.subr.bf16.mxu0 0
  %231 = vmatpush1.bf16.msra.mxu0 0
  %232 = vmatprep.mubr.bf16.mxu0 0
  %233 = vmatmul.mubr.bf16.gmra.mrb[0].mxu0 %v199
  %v234 = vpop.f32.mrb[0].mxu0
  %v235 = vadd.f32 0.0, %v234
  %v236 = vpop.f32.mrb[0].mxu0
  %v237 = vpop.f32.mrb[0].mxu0
  %v238 = vpop.f32.mrb[0].mxu0
  %239 = vdwg.mxu0
  %v240 = vadd.f32 %v198, %v235
  %v241 = vxor.u32 %v240, 2147483648
  %v242 = vmul.f32 %v241, 1.442695
  %v243 = vpow.pop %v242
  %v244 = vadd.f32 %v243, 1.0
  %v245 = vrcp.pop %v244
  %v246 = vmul.f32 1.0, %v245
  %247 = vrot.lane.b32.xlu0 %v246, 64
  %v248 = vpop.permute.xlu0 %247
  %v249 = vmul.f32 %v248, 2.0
  %v250 = vsub.f32 %v249, 1.0
  %v251 = vmul.f32 %v246, %v250
  %252 = vrot.lane.b32.xlu0 %v246, 96
  %v253 = vpop.permute.xlu0 %252
  %v254 = vmul.f32 %v253, %v188
  %v255 = vadd.f32 %v254, %v251
  %256 = vrot.lane.b32.xlu0 %v246, 32
  %v257 = vpop.permute.xlu0 %256
  %v258 = vtanh.pop %v255
  %v259 = vmul.f32 %v257, %v258
  %260 = vset.pattern.permute.xlu0 3
  %261 = vperm.xlu0 %260, %v37
  %v262 = vpop.permute.xlu0 %261
  %v264 = vmul.f32 %v262, %v43
  %v265 = vadd.f32 %v264, %v50
  %v266 = vpack.c.bf16 %v259, %v259
  %267 = vmatprep.subr.bf16.mxu0 0
  %268 = vmatpush1.bf16.msra.mxu0 %v117
  %269 = vmatprep.subr.bf16.mxu0 0
  %270 = vmatpush1.bf16.msra.mxu0 %v118
  %271 = vmatprep.subr.bf16.mxu0 0
  %272 = vmatpush1.bf16.msra.mxu0 %v119
  %273 = vmatprep.subr.bf16.mxu0 0
  %274 = vmatpush1.bf16.msra.mxu0 %v120
  %275 = vmatprep.subr.bf16.mxu0 0
  %276 = vmatpush1.bf16.msra.mxu0 %v121
  %277 = vmatprep.subr.bf16.mxu0 0
  %278 = vmatpush1.bf16.msra.mxu0 %v122
  %279 = vmatprep.subr.bf16.mxu0 0
  %280 = vmatpush1.bf16.msra.mxu0 %v123
  %281 = vmatprep.subr.bf16.mxu0 0
  %282 = vmatpush1.bf16.msra.mxu0 %v124
  %283 = vmatprep.subr.bf16.mxu0 0
  %284 = vmatpush1.bf16.msra.mxu0 0
  %285 = vmatprep.subr.bf16.mxu0 0
  %286 = vmatpush1.bf16.msra.mxu0 0
  %287 = vmatprep.subr.bf16.mxu0 0
  %288 = vmatpush1.bf16.msra.mxu0 0
  %289 = vmatprep.subr.bf16.mxu0 0
  %290 = vmatpush1.bf16.msra.mxu0 0
  %291 = vmatprep.subr.bf16.mxu0 0
  %292 = vmatpush1.bf16.msra.mxu0 0
  %293 = vmatprep.subr.bf16.mxu0 0
  %294 = vmatpush1.bf16.msra.mxu0 0
  %295 = vmatprep.subr.bf16.mxu0 0
  %296 = vmatpush1.bf16.msra.mxu0 0
  %297 = vmatprep.subr.bf16.mxu0 0
  %298 = vmatpush1.bf16.msra.mxu0 0
  %299 = vmatprep.mubr.bf16.mxu0 0
  %300 = vmatmul.mubr.bf16.gmra.mrb[0].mxu0 %v266
  %v301 = vpop.f32.mrb[0].mxu0
  %v302 = vadd.f32 0.0, %v301
  %v303 = vpop.f32.mrb[0].mxu0
  %v304 = vpop.f32.mrb[0].mxu0
  %v305 = vpop.f32.mrb[0].mxu0
  %306 = vdwg.mxu0
  %v307 = vadd.f32 %v265, %v302
  %v308 = vxor.u32 %v307, 2147483648
  %v309 = vmul.f32 %v308, 1.442695
  %v310 = vpow.pop %v309
  %v311 = vadd.f32 %v310, 1.0
  %v312 = vrcp.pop %v311
  %v313 = vmul.f32 1.0, %v312
  %314 = vrot.lane.b32.xlu0 %v313, 64
  %v315 = vpop.permute.xlu0 %314
  %v316 = vmul.f32 %v315, 2.0
  %v317 = vsub.f32 %v316, 1.0
  %v318 = vmul.f32 %v313, %v317
  %319 = vrot.lane.b32.xlu0 %v313, 96
  %v320 = vpop.permute.xlu0 %319
  %v321 = vmul.f32 %v320, %v255
  %v322 = vadd.f32 %v321, %v318
  %323 = vrot.lane.b32.xlu0 %v313, 32
  %v324 = vpop.permute.xlu0 %323
  %v325 = vtanh.pop %v322
  %v326 = vmul.f32 %v324, %v325
  %327 = vset.pattern.permute.xlu0 4
  %328 = vperm.xlu0 %327, %v37
  %v329 = vpop.permute.xlu0 %328
  %v331 = vmul.f32 %v329, %v43
  %v332 = vadd.f32 %v331, %v50
  %v333 = vpack.c.bf16 %v326, %v326
  %334 = vmatprep.subr.bf16.mxu0 0
  %335 = vmatpush1.bf16.msra.mxu0 %v117
  %336 = vmatprep.subr.bf16.mxu0 0
  %337 = vmatpush1.bf16.msra.mxu0 %v118
  %338 = vmatprep.subr.bf16.mxu0 0
  %339 = vmatpush1.bf16.msra.mxu0 %v119
  %340 = vmatprep.subr.bf16.mxu0 0
  %341 = vmatpush1.bf16.msra.mxu0 %v120
  %342 = vmatprep.subr.bf16.mxu0 0
  %343 = vmatpush1.bf16.msra.mxu0 %v121
  %344 = vmatprep.subr.bf16.mxu0 0
  %345 = vmatpush1.bf16.msra.mxu0 %v122
  %346 = vmatprep.subr.bf16.mxu0 0
  %347 = vmatpush1.bf16.msra.mxu0 %v123
  %348 = vmatprep.subr.bf16.mxu0 0
  %349 = vmatpush1.bf16.msra.mxu0 %v124
  %350 = vmatprep.subr.bf16.mxu0 0
  %351 = vmatpush1.bf16.msra.mxu0 0
  %352 = vmatprep.subr.bf16.mxu0 0
  %353 = vmatpush1.bf16.msra.mxu0 0
  %354 = vmatprep.subr.bf16.mxu0 0
  %355 = vmatpush1.bf16.msra.mxu0 0
  %356 = vmatprep.subr.bf16.mxu0 0
  %357 = vmatpush1.bf16.msra.mxu0 0
  %358 = vmatprep.subr.bf16.mxu0 0
  %359 = vmatpush1.bf16.msra.mxu0 0
  %360 = vmatprep.subr.bf16.mxu0 0
  %361 = vmatpush1.bf16.msra.mxu0 0
  %362 = vmatprep.subr.bf16.mxu0 0
  %363 = vmatpush1.bf16.msra.mxu0 0
  %364 = vmatprep.subr.bf16.mxu0 0
  %365 = vmatpush1.bf16.msra.mxu0 0
  %366 = vmatprep.mubr.bf16.mxu0 0
  %367 = vmatmul.mubr.bf16.gmra.mrb[0].mxu0 %v333
  %v368 = vpop.f32.mrb[0].mxu0
  %v369 = vadd.f32 0.0, %v368
  %v370 = vpop.f32.mrb[0].mxu0
  %v371 = vpop.f32.mrb[0].mxu0
  %v372 = vpop.f32.mrb[0].mxu0
  %373 = vdwg.mxu0
  %v374 = vadd.f32 %v332, %v369
  %v375 = vxor.u32 %v374, 2147483648
  %v376 = vmul.f32 %v375, 1.442695
  %v377 = vpow.pop %v376
  %v378 = vadd.f32 %v377, 1.0
  %v379 = vrcp.pop %v378
  %v380 = vmul.f32 1.0, %v379
  %381 = vrot.lane.b32.xlu0 %v380, 64
  %v382 = vpop.permute.xlu0 %381
  %v383 = vmul.f32 %v382, 2.0
  %v384 = vsub.f32 %v383, 1.0
  %v385 = vmul.f32 %v380, %v384
  %386 = vrot.lane.b32.xlu0 %v380, 96
  %v387 = vpop.permute.xlu0 %386
  %v388 = vmul.f32 %v387, %v322
  %v389 = vadd.f32 %v388, %v385
  %390 = vrot.lane.b32.xlu0 %v380, 32
  %v391 = vpop.permute.xlu0 %390
  %v392 = vtanh.pop %v389
  %v393 = vmul.f32 %v391, %v392
  %394 = vset.pattern.permute.xlu0 5
  %395 = vperm.xlu0 %394, %v37
  %v396 = vpop.permute.xlu0 %395
  %v398 = vmul.f32 %v396, %v43
  %v399 = vadd.f32 %v398, %v50
  %v400 = vpack.c.bf16 %v393, %v393
  %401 = vmatprep.subr.bf16.mxu0 0
  %402 = vmatpush1.bf16.msra.mxu0 %v117
  %403 = vmatprep.subr.bf16.mxu0 0
  %404 = vmatpush1.bf16.msra.mxu0 %v118
  %405 = vmatprep.subr.bf16.mxu0 0
  %406 = vmatpush1.bf16.msra.mxu0 %v119
  %407 = vmatprep.subr.bf16.mxu0 0
  %408 = vmatpush1.bf16.msra.mxu0 %v120
  %409 = vmatprep.subr.bf16.mxu0 0
  %410 = vmatpush1.bf16.msra.mxu0 %v121
  %411 = vmatprep.subr.bf16.mxu0 0
  %412 = vmatpush1.bf16.msra.mxu0 %v122
  %413 = vmatprep.subr.bf16.mxu0 0
  %414 = vmatpush1.bf16.msra.mxu0 %v123
  %415 = vmatprep.subr.bf16.mxu0 0
  %416 = vmatpush1.bf16.msra.mxu0 %v124
  %417 = vmatprep.subr.bf16.mxu0 0
  %418 = vmatpush1.bf16.msra.mxu0 0
  %419 = vmatprep.subr.bf16.mxu0 0
  %420 = vmatpush1.bf16.msra.mxu0 0
  %421 = vmatprep.subr.bf16.mxu0 0
  %422 = vmatpush1.bf16.msra.mxu0 0
  %423 = vmatprep.subr.bf16.mxu0 0
  %424 = vmatpush1.bf16.msra.mxu0 0
  %425 = vmatprep.subr.bf16.mxu0 0
  %426 = vmatpush1.bf16.msra.mxu0 0
  %427 = vmatprep.subr.bf16.mxu0 0
  %428 = vmatpush1.bf16.msra.mxu0 0
  %429 = vmatprep.subr.bf16.mxu0 0
  %430 = vmatpush1.bf16.msra.mxu0 0
  %431 = vmatprep.subr.bf16.mxu0 0
  %432 = vmatpush1.bf16.msra.mxu0 0
  %433 = vmatprep.mubr.bf16.mxu0 0
  %434 = vmatmul.mubr.bf16.gmra.mrb[0].mxu0 %v400
  %v435 = vpop.f32.mrb[0].mxu0
  %v436 = vadd.f32 0.0, %v435
  %v437 = vpop.f32.mrb[0].mxu0
  %v438 = vpop.f32.mrb[0].mxu0
  %v439 = vpop.f32.mrb[0].mxu0
  %440 = vdwg.mxu0
  %v441 = vadd.f32 %v399, %v436
  %v442 = vxor.u32 %v441, 2147483648
  %v443 = vmul.f32 %v442, 1.442695
  %v444 = vpow.pop %v443
  %v445 = vadd.f32 %v444, 1.0
  %v446 = vrcp.pop %v445
  %v447 = vmul.f32 1.0, %v446
  %448 = vrot.lane.b32.xlu0 %v447, 64
  %v449 = vpop.permute.xlu0 %448
  %v450 = vmul.f32 %v449, 2.0
  %v451 = vsub.f32 %v450, 1.0
  %v452 = vmul.f32 %v447, %v451
  %453 = vrot.lane.b32.xlu0 %v447, 96
  %v454 = vpop.permute.xlu0 %453
  %v455 = vmul.f32 %v454, %v389
  %v456 = vadd.f32 %v455, %v452
  %457 = vrot.lane.b32.xlu0 %v447, 32
  %v458 = vpop.permute.xlu0 %457
  %v459 = vtanh.pop %v456
  %v460 = vmul.f32 %v458, %v459
  %461 = vset.pattern.permute.xlu0 6
  %462 = vperm.xlu0 %461, %v37
  %v463 = vpop.permute.xlu0 %462
  %v465 = vmul.f32 %v463, %v43
  %v466 = vadd.f32 %v465, %v50
  %v467 = vpack.c.bf16 %v460, %v460
  %468 = vmatprep.subr.bf16.mxu0 0
  %469 = vmatpush1.bf16.msra.mxu0 %v117
  %470 = vmatprep.subr.bf16.mxu0 0
  %471 = vmatpush1.bf16.msra.mxu0 %v118
  %472 = vmatprep.subr.bf16.mxu0 0
  %473 = vmatpush1.bf16.msra.mxu0 %v119
  %474 = vmatprep.subr.bf16.mxu0 0
  %475 = vmatpush1.bf16.msra.mxu0 %v120
  %476 = vmatprep.subr.bf16.mxu0 0
  %477 = vmatpush1.bf16.msra.mxu0 %v121
  %478 = vmatprep.subr.bf16.mxu0 0
  %479 = vmatpush1.bf16.msra.mxu0 %v122
  %480 = vmatprep.subr.bf16.mxu0 0
  %481 = vmatpush1.bf16.msra.mxu0 %v123
  %482 = vmatprep.subr.bf16.mxu0 0
  %483 = vmatpush1.bf16.msra.mxu0 %v124
  %484 = vmatprep.subr.bf16.mxu0 0
  %485 = vmatpush1.bf16.msra.mxu0 0
  %486 = vmatprep.subr.bf16.mxu0 0
  %487 = vmatpush1.bf16.msra.mxu0 0
  %488 = vmatprep.subr.bf16.mxu0 0
  %489 = vmatpush1.bf16.msra.mxu0 0
  %490 = vmatprep.subr.bf16.mxu0 0
  %491 = vmatpush1.bf16.msra.mxu0 0
  %492 = vmatprep.subr.bf16.mxu0 0
  %493 = vmatpush1.bf16.msra.mxu0 0
  %494 = vmatprep.subr.bf16.mxu0 0
  %495 = vmatpush1.bf16.msra.mxu0 0
  %496 = vmatprep.subr.bf16.mxu0 0
  %497 = vmatpush1.bf16.msra.mxu0 0
  %498 = vmatprep.subr.bf16.mxu0 0
  %499 = vmatpush1.bf16.msra.mxu0 0
  %500 = vmatprep.mubr.bf16.mxu0 0
  %501 = vmatmul.mubr.bf16.gmra.mrb[0].mxu0 %v467
  %v502 = vpop.f32.mrb[0].mxu0
  %v503 = vadd.f32 0.0, %v502
  %v504 = vpop.f32.mrb[0].mxu0
  %v505 = vpop.f32.mrb[0].mxu0
  %v506 = vpop.f32.mrb[0].mxu0
  %507 = vdwg.mxu0
  %v508 = vadd.f32 %v466, %v503
  %v509 = vxor.u32 %v508, 2147483648
  %v510 = vmul.f32 %v509, 1.442695
  %v511 = vpow.pop %v510
  %v512 = vadd.f32 %v511, 1.0
  %v513 = vrcp.pop %v512
  %v514 = vmul.f32 1.0, %v513
  %515 = vrot.lane.b32.xlu0 %v514, 64
  %v516 = vpop.permute.xlu0 %515
  %v517 = vmul.f32 %v516, 2.0
  %v518 = vsub.f32 %v517, 1.0
  %v519 = vmul.f32 %v514, %v518
  %520 = vrot.lane.b32.xlu0 %v514, 96
  %v521 = vpop.permute.xlu0 %520
  %v522 = vmul.f32 %v521, %v456
  %v523 = vadd.f32 %v522, %v519
  %524 = vrot.lane.b32.xlu0 %v514, 32
  %v525 = vpop.permute.xlu0 %524
  %v526 = vtanh.pop %v523
  %v527 = vmul.f32 %v525, %v526
  %528 = vset.pattern.permute.xlu0 7
  %529 = vperm.xlu0 %528, %v37
  %v530 = vpop.permute.xlu0 %529
  %v532 = vmul.f32 %v530, %v43
  %v533 = vadd.f32 %v532, %v50
  %v534 = vpack.c.bf16 %v527, %v527
  %535 = vmatprep.subr.bf16.mxu0 0
  %536 = vmatpush1.bf16.msra.mxu0 %v117
  %537 = vmatprep.subr.bf16.mxu0 0
  %538 = vmatpush1.bf16.msra.mxu0 %v118
  %539 = vmatprep.subr.bf16.mxu0 0
  %540 = vmatpush1.bf16.msra.mxu0 %v119
  %541 = vmatprep.subr.bf16.mxu0 0
  %542 = vmatpush1.bf16.msra.mxu0 %v120
  %543 = vmatprep.subr.bf16.mxu0 0
  %544 = vmatpush1.bf16.msra.mxu0 %v121
  %545 = vmatprep.subr.bf16.mxu0 0
  %546 = vmatpush1.bf16.msra.mxu0 %v122
  %547 = vmatprep.subr.bf16.mxu0 0
  %548 = vmatpush1.bf16.msra.mxu0 %v123
  %549 = vmatprep.subr.bf16.mxu0 0
  %550 = vmatpush1.bf16.msra.mxu0 %v124
  %551 = vmatprep.subr.bf16.mxu0 0
  %552 = vmatpush1.bf16.msra.mxu0 0
  %553 = vmatprep.subr.bf16.mxu0 0
  %554 = vmatpush1.bf16.msra.mxu0 0
  %555 = vmatprep.subr.bf16.mxu0 0
  %556 = vmatpush1.bf16.msra.mxu0 0
  %557 = vmatprep.subr.bf16.mxu0 0
  %558 = vmatpush1.bf16.msra.mxu0 0
  %559 = vmatprep.subr.bf16.mxu0 0
  %560 = vmatpush1.bf16.msra.mxu0 0
  %561 = vmatprep.subr.bf16.mxu0 0
  %562 = vmatpush1.bf16.msra.mxu0 0
  %563 = vmatprep.subr.bf16.mxu0 0
  %564 = vmatpush1.bf16.msra.mxu0 0
  %565 = vmatprep.subr.bf16.mxu0 0
  %566 = vmatpush1.bf16.msra.mxu0 0
  %567 = vmatprep.mubr.bf16.mxu0 0
  %568 = vmatmul.mubr.bf16.gmra.mrb[0].mxu0 %v534
  %v569 = vpop.f32.mrb[0].mxu0
  %v570 = vadd.f32 0.0, %v569
  %v571 = vpop.f32.mrb[0].mxu0
  %v572 = vpop.f32.mrb[0].mxu0
  %v573 = vpop.f32.mrb[0].mxu0
  %574 = vdwg.mxu0
  %v575 = vadd.f32 %v533, %v570
  %v576 = vxor.u32 %v575, 2147483648
  %v577 = vmul.f32 %v576, 1.442695
  %v578 = vpow.pop %v577
  %v579 = vadd.f32 %v578, 1.0
  %v580 = vrcp.pop %v579
  %v581 = vmul.f32 1.0, %v580
  %582 = vrot.lane.b32.xlu0 %v581, 64
  %v583 = vpop.permute.xlu0 %582
  %v584 = vmul.f32 %v583, 2.0
  %v585 = vsub.f32 %v584, 1.0
  %v586 = vmul.f32 %v581, %v585
  %587 = vrot.lane.b32.xlu0 %v581, 96
  %v588 = vpop.permute.xlu0 %587
  %v589 = vmul.f32 %v588, %v523
  %v590 = vadd.f32 %v589, %v586
  %591 = vrot.lane.b32.xlu0 %v581, 32
  %v592 = vpop.permute.xlu0 %591
  %v593 = vtanh.pop %v590
  %v594 = vmul.f32 %v592, %v593
  %v595 = vld [vmem:[%s4] sm:$0xff]
  %596 = vmatprep.subr.mxu0 0.0
  %597 = vmatpush1.xpose.msra.mxu0 %v594
  %598 = vmatprep.subr.mxu0 0.0
  %599 = vmatpush1.xpose.msra.mxu0 0.0
  %600 = vmatprep.subr.mxu0 0.0
  %601 = vmatpush1.xpose.msra.mxu0 0.0
  %602 = vmatprep.subr.mxu0 0.0
  %603 = vmatpush1.xpose.msra.mxu0 0.0
  %604 = vmatprep.subr.mxu0 0.0
  %605 = vmatpush1.xpose.msra.mxu0 0.0
  %606 = vmatprep.subr.mxu0 0.0
  %607 = vmatpush1.xpose.msra.mxu0 0.0
  %608 = vmatprep.subr.mxu0 0.0
  %609 = vmatpush1.xpose.msra.mxu0 0.0
  %610 = vmatprep.subr.mxu0 0.0
  %611 = vmatpush1.xpose.msra.mxu0 0.0
  %612 = vmatprep.subr.mxu0 0.0
  %613 = vmatpush1.xpose.msra.mxu0 0.0
  %614 = vmatprep.subr.mxu0 0.0
  %615 = vmatpush1.xpose.msra.mxu0 0.0
  %616 = vmatprep.subr.mxu0 0.0
  %617 = vmatpush1.xpose.msra.mxu0 0.0
  %618 = vmatprep.subr.mxu0 0.0
  %619 = vmatpush1.xpose.msra.mxu0 0.0
  %620 = vmatprep.subr.mxu0 0.0
  %621 = vmatpush1.xpose.msra.mxu0 0.0
  %622 = vmatprep.subr.mxu0 0.0
  %623 = vmatpush1.xpose.msra.mxu0 0.0
  %624 = vmatprep.subr.mxu0 0.0
  %625 = vmatpush1.xpose.msra.mxu0 0.0
  %626 = vmatprep.subr.mxu0 0.0
  %627 = vmatpush1.xpose.msra.mxu0 0.0
  %628 = vmatprep.subr.mxu0 0.0
  %629 = vmatpush1.xpose.msra.mxu0 0.0
  %630 = vmatprep.subr.mxu0 0.0
  %631 = vmatpush1.xpose.msra.mxu0 0.0
  %632 = vmatprep.subr.mxu0 0.0
  %633 = vmatpush1.xpose.msra.mxu0 0.0
  %634 = vmatprep.subr.mxu0 0.0
  %635 = vmatpush1.xpose.msra.mxu0 0.0
  %636 = vmatprep.subr.mxu0 0.0
  %637 = vmatpush1.xpose.msra.mxu0 0.0
  %638 = vmatprep.subr.mxu0 0.0
  %639 = vmatpush1.xpose.msra.mxu0 0.0
  %640 = vmatprep.subr.mxu0 0.0
  %641 = vmatpush1.xpose.msra.mxu0 0.0
  %642 = vmatprep.subr.mxu0 0.0
  %643 = vmatpush1.xpose.msra.mxu0 0.0
  %644 = vmatprep.subr.mxu0 0.0
  %645 = vmatpush1.xpose.msra.mxu0 0.0
  %646 = vmatprep.subr.mxu0 0.0
  %647 = vmatpush1.xpose.msra.mxu0 0.0
  %648 = vmatprep.subr.mxu0 0.0
  %649 = vmatpush1.xpose.msra.mxu0 0.0
  %650 = vmatprep.subr.mxu0 0.0
  %651 = vmatpush1.xpose.msra.mxu0 0.0
  %652 = vmatprep.subr.mxu0 0.0
  %653 = vmatpush1.xpose.msra.mxu0 0.0
  %654 = vmatprep.subr.mxu0 0.0
  %655 = vmatpush1.xpose.msra.mxu0 0.0
  %656 = vmatprep.subr.mxu0 0.0
  %657 = vmatpush1.xpose.msra.mxu0 0.0
  %658 = vmatprep.subr.mxu0 0.0
  %659 = vmatpush1.xpose.msra.mxu0 0.0
  %660 = vmatprep.mubr.f32.mxu0 0.0
  %661 = vmatmul.mubr.f32.gmra.mrb[0].mxu0 %v595
  %v662 = vpop.f32.mrb[0].mxu0
  %v663 = vadd.f32 0.0, %v662
  %v664 = vpop.f32.mrb[0].mxu0
  %665 = vdwg.mxu0
  %vm666 = vcmask 64512
  %667 = vst.msk [vmem:[%s5] sm:$0xff] %vm666, %v663
  // Predicated region
  $region22: #{lstm_outbreak_predictor.1} parent=0 // pred_check
    _
  $region23: #{lstm_outbreak_predictor.1} parent=0 // pred_check_branch
    %669 = sbr.rel (0) target = $region25
  $region24: #{lstm_outbreak_predictor.1} parent=0 // pred_region
    _
  $region25: #{lstm_outbreak_predictor.1} parent=0 // pred_fallthru
    _
  // Predicated region
  $region26: #{lstm_outbreak_predictor.1} parent=0 // pred_check
    _
  $region27: #{lstm_outbreak_predictor.1} parent=0 // pred_check_branch
    %671 = sbr.rel (0) target = $region29
  $region28: #{lstm_outbreak_predictor.1} parent=0 // pred_region
    _
  $region29: #{lstm_outbreak_predictor.1} parent=0 // pred_fallthru
    _

</llo_original>
